<compile_context>
chip_gen: v6e
topology: v6e:2x2x1
jax: 0.10.0
libtpu: 0.0.40
codegen_flags: <defaults>
</compile_context>

<pallas_src>
import functools

import jax
import jax.numpy as jnp
import numpy as np
from jax import lax
from jax.experimental import pallas as pl
from jax.experimental.pallas import tpu as pltpu

LANE = 128
SUBLANE = 8


def _round_up(a, b):
    return -(-a // b) * b


# ---------------------------------------------------------------------------
# support = x @ W   (bf16 MXU feeds, f32 accumulation)
# ---------------------------------------------------------------------------
def _support_kernel(x_ref, w_ref, o_ref):
    x = x_ref[...].astype(jnp.bfloat16)
    w = w_ref[...].astype(jnp.bfloat16)
    o_ref[...] = jnp.dot(x, w, preferred_element_type=jnp.float32).astype(o_ref.dtype)


def _compute_support(x_p, w_p, t_row, out_dtype):
    n_pad, fin = x_p.shape
    fp = w_p.shape[1]
    return pl.pallas_call(
        _support_kernel,
        out_shape=jax.ShapeDtypeStruct((n_pad, fp), out_dtype),
        grid=(n_pad // t_row,),
        in_specs=[
            pl.BlockSpec((t_row, fin), lambda i: (i, 0)),   # x row tile
            pl.BlockSpec((fin, fp), lambda i: (0, 0)),      # W resident
        ],
        out_specs=pl.BlockSpec((t_row, fp), lambda i: (i, 0)),
        compiler_params=pltpu.CompilerParams(dimension_semantics=("parallel",)),
        cost_estimate=pl.CostEstimate(
            flops=2 * n_pad * fin * fp,
            transcendentals=0,
            bytes_accessed=4 * (n_pad * fin + fin * fp + n_pad * fp)),
    )(x_p, w_p)


# ---------------------------------------------------------------------------
# Aggregation kernels
# ---------------------------------------------------------------------------
def _gcn_kernel(adj_ref, sup_ref, b_ref, o_ref, acc_ref):
    k = pl.program_id(1)

    @pl.when(k == 0)
    def _init():
        acc_ref[...] = jnp.zeros_like(acc_ref)

    # bf16 x bf16 -> f32 accumulate on the MXU (single pass, no HIGHEST).
    acc_ref[...] += jnp.dot(adj_ref[...], sup_ref[...],
                            preferred_element_type=jnp.float32)

    @pl.when(k == pl.num_programs(1) - 1)
    def _done():
        o_ref[...] = (acc_ref[...] + b_ref[...]).astype(o_ref.dtype)


def _mean_kernel(adj_ref, sup_ref, b_ref, o_ref, acc_ref, cnt_ref):
    k = pl.program_id(1)

    @pl.when(k == 0)
    def _init():
        acc_ref[...] = jnp.zeros_like(acc_ref)
        cnt_ref[...] = jnp.zeros_like(cnt_ref)

    adj = adj_ref[...]                                   # bf16 (TM, TK)
    sup = sup_ref[...]                                   # bf16 (TK, Fp)
    acc_ref[...] += jnp.dot(adj, sup, preferred_element_type=jnp.float32)
    # nonzero-product count: 0/1 indicators are exact in bf16, sums exact in f32
    cnt_ref[...] += jnp.dot((adj != 0).astype(jnp.bfloat16),
                            (sup != 0).astype(jnp.bfloat16),
                            preferred_element_type=jnp.float32)

    @pl.when(k == pl.num_programs(1) - 1)
    def _done():
        # Bug-compatible with torch: count == 0 -> 0 * inf = NaN (div by zero count).
        out = acc_ref[...] * pl.reciprocal(cnt_ref[...], approx=False)
        o_ref[...] = (out + b_ref[...]).astype(o_ref.dtype)


def _make_max_kernel(n_true, t_k, nk_pad):
    need_mask = nk_pad != n_true

    def kernel(adj_ref, sup_ref, b_ref, o_ref, run_ref):
        k = pl.program_id(1)

        @pl.when(k == 0)
        def _init():
            run_ref[...] = jnp.full_like(run_ref, -jnp.inf)

        adj = adj_ref[...].astype(jnp.float32)           # (TM, TK)
        sup = sup_ref[...]                               # (TK, Fp) f32
        # Tile-bounded product chunk; running max keeps only (TM, Fp) state.
        p = adj[:, :, None] * sup[None, :, :]            # (TM, TK, Fp)
        if need_mask:
            m_idx = lax.broadcasted_iota(jnp.int32, p.shape, 1) + k * t_k
            p = jnp.where(m_idx < n_true, p, -jnp.inf)
        run_ref[...] = jnp.maximum(run_ref[...], jnp.max(p, axis=1))

        @pl.when(k == pl.num_programs(1) - 1)
        def _done():
            o_ref[...] = (run_ref[...] + b_ref[...]).astype(o_ref.dtype)

    return kernel


def _make_min_kernel(n_true, n_pad):
    need_mask = n_pad != n_true

    def kernel(adjT_ref, sup_ref, b_ref, o_ref, p_ref):
        adjT = adjT_ref[...].astype(jnp.float32)         # (NP, TM)  (adj columns)
        sup = sup_ref[...]                               # (NP, Fp) f32
        p = adjT[:, :, None] * sup[:, None, :]           # (NP, TM, Fp)
        nnz = jnp.sum((p != 0).astype(jnp.float32), axis=0)        # (TM, Fp)
        if need_mask:
            m_idx = lax.broadcasted_iota(jnp.int32, p.shape, 0)
            p = jnp.where(m_idx < n_true, p, -jnp.inf)   # exclude padded neighbours
        p_ref[...] = p

        # torch MIN == k-th largest product with k = count_nonzero.  Selection by
        # threshold-max:  result = max{ v in products : #(products >= v) >= k }.
        def body(m, sel):
            p_m = p_ref[m]                               # (TM, Fp), dynamic 1st-axis index
            cnt_ge = jnp.sum((p_ref[...] >= p_m[None, :, :]).astype(jnp.float32),
                             axis=0)
            cand = jnp.where(cnt_ge >= nnz, p_m, -jnp.inf)
            return jnp.maximum(sel, cand)

        sel = lax.fori_loop(0, n_true, body,
                            jnp.full(nnz.shape, -jnp.inf, jnp.float32))
        out = jnp.where(nnz == 0, jnp.float32(0.0), sel)  # all-zero row -> min == 0
        o_ref[...] = (out + b_ref[...]).astype(o_ref.dtype)

    return kernel


# ---------------------------------------------------------------------------
# Wrapper
# ---------------------------------------------------------------------------
@functools.partial(jax.jit, static_argnames=("func",))
def gg_forward(x, adj, my_adj, weight, bias, func="GCN"):
    """Pallas implementation of GG.forward(input, adj, my_adj)."""
    del my_adj                      # unused by the torch forward pass as well
    n, fin = x.shape
    fout = weight.shape[1]
    f32 = jnp.float32

    # ---- padded / tiled geometry -------------------------------------------
    fp = _round_up(fout, LANE)                  # lane-dense output columns
    if n >= 256:
        n_pad = _round_up(n, 256)
        t_row = t_k = 256                       # GCN / MEAN matmul tiles (bf16, <=128 KiB)
        t_row_mx, t_k_mx = 64, 128              # MAX tiles (rank-3 chunk stays small)
        t_row_mn = 128                          # MIN row tile
    else:
        n_pad = _round_up(n, SUBLANE)
        t_row = t_k = n_pad
        t_row_mx = t_k_mx = n_pad
        t_row_mn = n_pad

    # ---- padded operands -----------------------------------------------------
    x_p = jnp.zeros((n_pad, fin), f32).at[:n, :].set(x.astype(f32))
    w_p = jnp.zeros((fin, fp), f32).at[:, :fout].set(weight.astype(f32))
    b = bias if bias is not None else jnp.zeros((fout,), f32)
    b_p = jnp.zeros((1, fp), f32).at[0, :fout].set(b.astype(f32))
    # adjacency entries are 0/1 -> bf16 is lossless and halves the dominant DMA
    adj_p = jnp.zeros((n_pad, n_pad), jnp.bfloat16).at[:n, :n].set(
        adj.astype(jnp.bfloat16))

    # ---- support = x @ W (computed once, then streamed by the aggregation) ---
    sup_dtype = jnp.bfloat16 if func in ("GCN", "MEAN") else f32
    support = _compute_support(x_p, w_p, t_row, sup_dtype)          # (n_pad, fp)

    if func in ("GCN", "MEAN"):
        kernel = _gcn_kernel if func == "GCN" else _mean_kernel
        n_scratch = 1 if func == "GCN" else 2
        out_p = pl.pallas_call(
            kernel,
            out_shape=jax.ShapeDtypeStruct((n_pad, fp), f32),
            grid=(n_pad // t_row, n_pad // t_k),
            in_specs=[
                pl.BlockSpec((t_row, t_k), lambda i, k: (i, k)),     # adj tile
                pl.BlockSpec((t_k, fp), lambda i, k: (k, 0)),        # support tile
                pl.BlockSpec((1, fp), lambda i, k: (0, 0)),          # bias
            ],
            out_specs=pl.BlockSpec((t_row, fp), lambda i, k: (i, 0)),
            scratch_shapes=[pltpu.VMEM((t_row, fp), f32)] * n_scratch,
            compiler_params=pltpu.CompilerParams(
                dimension_semantics=("parallel", "arbitrary")),
            cost_estimate=pl.CostEstimate(
                flops=(2 if func == "GCN" else 4) * n_pad * n_pad * fp,
                transcendentals=n_pad * fp if func == "MEAN" else 0,
                bytes_accessed=2 * n_pad * n_pad + 2 * n_pad * fp + 4 * n_pad * fp),
        )(adj_p, support, b_p)

    elif func == "MAX":
        kernel = _make_max_kernel(n, t_k_mx, n_pad)
        out_p = pl.pallas_call(
            kernel,
            out_shape=jax.ShapeDtypeStruct((n_pad, fp), f32),
            grid=(n_pad // t_row_mx, n_pad // t_k_mx),
            in_specs=[
                pl.BlockSpec((t_row_mx, t_k_mx), lambda i, k: (i, k)),
                pl.BlockSpec((t_k_mx, fp), lambda i, k: (k, 0)),
                pl.BlockSpec((1, fp), lambda i, k: (0, 0)),
            ],
            out_specs=pl.BlockSpec((t_row_mx, fp), lambda i, k: (i, 0)),
            scratch_shapes=[pltpu.VMEM((t_row_mx, fp), f32)],
            compiler_params=pltpu.CompilerParams(
                dimension_semantics=("parallel", "arbitrary")),
            cost_estimate=pl.CostEstimate(
                flops=2 * n_pad * n_pad * fp, transcendentals=0,
                bytes_accessed=2 * n_pad * n_pad + 8 * n_pad * fp),
        )(adj_p, support, b_p)

    elif func == "MIN":
        # TODO(synk): the per-row-tile product scratch is O(N * t_row_mn * Fp);
        # very large graphs additionally need a neighbour-chunked two-pass count.
        kernel = _make_min_kernel(n, n_pad)
        out_p = pl.pallas_call(
            kernel,
            out_shape=jax.ShapeDtypeStruct((n_pad, fp), f32),
            grid=(n_pad // t_row_mn,),
            in_specs=[
                pl.BlockSpec((n_pad, t_row_mn), lambda i: (0, i)),   # adj^T column tile
                pl.BlockSpec((n_pad, fp), lambda i: (0, 0)),         # support resident
                pl.BlockSpec((1, fp), lambda i: (0, 0)),             # bias
            ],
            out_specs=pl.BlockSpec((t_row_mn, fp), lambda i: (i, 0)),
            scratch_shapes=[pltpu.VMEM((n_pad, t_row_mn, fp), f32)],
            compiler_params=pltpu.CompilerParams(
                dimension_semantics=("parallel",)),
            cost_estimate=pl.CostEstimate(
                flops=(n + 2) * n_pad * n_pad * fp, transcendentals=0,
                bytes_accessed=2 * n_pad * n_pad + 8 * n_pad * fp),
        )(adj_p.T, support, b_p)

    else:
        # torch's else-branch is itself a bug (`torch.mm(adj.support)`); reject.
        raise ValueError(f"unknown func {func!r}")

    return out_p[:n, :fout]


# ---------------------------------------------------------------------------
# Reference + self-test
# ---------------------------------------------------------------------------
def gg_reference(x, weight, adj, bias, func):
    """Pure numpy transcription of the torch forward (full f32)."""
    x = np.asarray(x, np.float32)
    weight = np.asarray(weight, np.float32)
    adj = np.asarray(adj, np.float32)
    support = x @ weight
    n, f = adj.shape[0], support.shape[1]
    if func == "GCN":
        out = adj @ support
    else:
        out = np.empty((n, f), np.float32)
        for i in range(n):
            for j in range(f):
                p = adj[i] * support[:, j]
                k = int(np.count_nonzero(p))
                if func == "MEAN":
                    out[i, j] = p.sum() / k
                elif func == "MAX":
                    out[i, j] = p.max()
                elif func == "MIN":
                    s = np.sort(p)[::-1]
                    out[i, j] = s[:k].min() if k > 0 else s.min()
    if bias is not None:
        out = out + np.asarray(bias, np.float32)
    return out


if __name__ == "__main__":
    N, IN_FEATURES, OUT_FEATURES = 8, 16, 32

    key = jax.random.PRNGKey(0)
    k_x, k_adj, k_w, k_b = jax.random.split(key, 4)

    # node features
    x = jax.random.normal(k_x, (N, IN_FEATURES), jnp.float32)

    # binary adjacency with self loops -> every row has >= 1 nonzero neighbour
    a = (jax.random.uniform(k_adj, (N, N)) < 0.35).astype(jnp.float32)
    adj = jnp.clip(a + a.T + jnp.eye(N, dtype=jnp.float32), 0.0, 1.0)
    my_adj = adj  # unused by the forward pass (kept for signature parity)

    # deterministic parameter init mirroring reset_parameters():
    # uniform(-stdv, stdv) with stdv = 1/sqrt(out_features)
    stdv = 1.0 / float(np.sqrt(OUT_FEATURES))
    weight = jax.random.uniform(k_w, (IN_FEATURES, OUT_FEATURES), jnp.float32,
                                minval=-stdv, maxval=stdv)
    bias = jax.random.uniform(k_b, (OUT_FEATURES,), jnp.float32,
                              minval=-stdv, maxval=stdv)

    # Tolerance accounts for bf16 MXU feeds (single-pass, f32 accumulate);
    # observed error is ~1e-3, 1e-2 gives comfortable margin.
    for func in ("GCN", "MEAN", "MAX", "MIN"):
        out = gg_forward(x, adj, my_adj, weight, bias, func=func)
        out = jax.block_until_ready(out)
        ref = gg_reference(x, weight, adj, bias, func)
        np.testing.assert_allclose(np.asarray(out), ref, rtol=1e-2, atol=1e-2)

    print("KERNEL_OK")
</pallas_src>

<mosaic_0001>
module attributes {stable_mosaic.version = 11 : i64} {
  func.func @_support_kernel(%arg0: i32, %arg1: memref<8x16xf32, #tpu.memory_space<vmem>>, %arg2: memref<16x128xf32, #tpu.memory_space<vmem>>, %arg3: memref<8x128xbf16, #tpu.memory_space<vmem>>) attributes {dimension_semantics = [#tpu.dimension_semantics<parallel>], iteration_bounds = array<i64: 1>, scalar_prefetch = 0 : i64, scratch_operands = 0 : i64, tpu.core_type = #tpu.core_type<tc>, window_params = [{transform_indices = @transform_0, window_bounds = array<i64: 8, 16>}, {pipeline_mode = #tpu.pipeline_mode<synchronous>, transform_indices = @transform_1, window_bounds = array<i64: 16, 128>}, {transform_indices = @transform_2, window_bounds = array<i64: 8, 128>}]} {
    %c0 = arith.constant 0 : index
    %c0_0 = arith.constant 0 : index
    %0 = vector.load %arg1[%c0, %c0_0] : memref<8x16xf32, #tpu.memory_space<vmem>>, vector<8x16xf32>
    %1 = arith.truncf %0 : vector<8x16xf32> to vector<8x16xbf16>
    %c0_1 = arith.constant 0 : index
    %c0_2 = arith.constant 0 : index
    %2 = vector.load %arg2[%c0_1, %c0_2] : memref<16x128xf32, #tpu.memory_space<vmem>>, vector<16x128xf32>
    %3 = arith.truncf %2 : vector<16x128xf32> to vector<16x128xbf16>
    %cst = arith.constant dense<0.000000e+00> : vector<8x128xf32>
    %4 = tpu.matmul %1, %3, %cst {dimension_numbers = #tpu.dot_dimension_numbers<[1], [0], [0], [1], [0, 0, 1, 1], [], []>} : vector<8x16xbf16>, vector<16x128xbf16>, vector<8x128xf32> -> vector<8x128xf32>
    %5 = arith.truncf %4 : vector<8x128xf32> to vector<8x128xbf16>
    %c0_3 = arith.constant 0 : index
    %c0_4 = arith.constant 0 : index
    %6 = vector.load %arg3[%c0_3, %c0_4] : memref<8x128xbf16, #tpu.memory_space<vmem>>, vector<8x128xbf16>
    tpu.vector_store %arg3[%c0_3, %c0_4], %5 {strides = array<i32>} : memref<8x128xbf16, #tpu.memory_space<vmem>>, vector<8x128xbf16>,
    return
  }
  func.func @transform_0(%arg0: i32) -> (i32, i32) {
    %c0_i32 = arith.constant 0 : i32
    %c0_i32_0 = arith.constant 0 : i32
    return %arg0, %c0_i32 : i32, i32
  }
  func.func @transform_1(%arg0: i32) -> (i32, i32) {
    %c0_i32 = arith.constant 0 : i32
    %c0_i32_0 = arith.constant 0 : i32
    %c0_i32_1 = arith.constant 0 : i32
    return %c0_i32, %c0_i32_0 : i32, i32
  }
  func.func @transform_2(%arg0: i32) -> (i32, i32) {
    %c0_i32 = arith.constant 0 : i32
    %c0_i32_0 = arith.constant 0 : i32
    return %arg0, %c0_i32 : i32, i32
  }
}

module attributes {stable_mosaic.version = 11 : i64} {
  func.func @_gcn_kernel(%arg0: i32, %arg1: i32, %arg2: memref<8x8xbf16, #tpu.memory_space<vmem>>, %arg3: memref<8x128xbf16, #tpu.memory_space<vmem>>, %arg4: memref<1x128xf32, #tpu.memory_space<vmem>>, %arg5: memref<8x128xf32, #tpu.memory_space<vmem>>, %arg6: memref<8x128xf32, #tpu.memory_space<vmem>>) attributes {dimension_semantics = [#tpu.dimension_semantics<parallel>, #tpu.dimension_semantics<arbitrary>], iteration_bounds = array<i64: 1, 1>, scalar_prefetch = 0 : i64, scratch_operands = 1 : i64, tpu.core_type = #tpu.core_type<tc>, window_params = [{transform_indices = @transform_0, window_bounds = array<i64: 8, 8>}, {transform_indices = @transform_1, window_bounds = array<i64: 8, 128>}, {pipeline_mode = #tpu.pipeline_mode<synchronous>, transform_indices = @transform_2, window_bounds = array<i64: 1, 128>}, {transform_indices = @transform_3, window_bounds = array<i64: 8, 128>}]} {
    %c0_i32 = arith.constant 0 : i32
    %0 = arith.cmpi eq, %arg1, %c0_i32 : i32
    %1 = arith.extui %0 : i1 to i32
    %c0_i32_0 = arith.constant 0 : i32
    %2 = arith.cmpi ne, %1, %c0_i32_0 : i32
    scf.if %2 {
      %cst_10 = arith.constant 0.000000e+00 : f32
      %12 = vector.broadcast %cst_10 : f32 to vector<8x128xf32>
      %c0_11 = arith.constant 0 : index
      %c0_12 = arith.constant 0 : index
      %13 = vector.load %arg6[%c0_11, %c0_12] : memref<8x128xf32, #tpu.memory_space<vmem>>, vector<8x128xf32>
      tpu.vector_store %arg6[%c0_11, %c0_12], %12 {strides = array<i32>} : memref<8x128xf32, #tpu.memory_space<vmem>>, vector<8x128xf32>,
    } else {
    }
    %c0 = arith.constant 0 : index
    %c0_1 = arith.constant 0 : index
    %3 = vector.load %arg6[%c0, %c0_1] : memref<8x128xf32, #tpu.memory_space<vmem>>, vector<8x128xf32>
    %c0_2 = arith.constant 0 : index
    %c0_3 = arith.constant 0 : index
    %4 = vector.load %arg2[%c0_2, %c0_3] : memref<8x8xbf16, #tpu.memory_space<vmem>>, vector<8x8xbf16>
    %c0_4 = arith.constant 0 : index
    %c0_5 = arith.constant 0 : index
    %5 = vector.load %arg3[%c0_4, %c0_5] : memref<8x128xbf16, #tpu.memory_space<vmem>>, vector<8x128xbf16>
    %cst = arith.constant dense<0.000000e+00> : vector<8x128xf32>
    %6 = tpu.matmul %4, %5, %cst {dimension_numbers = #tpu.dot_dimension_numbers<[1], [0], [0], [1], [0, 0, 1, 1], [], []>} : vector<8x8xbf16>, vector<8x128xbf16>, vector<8x128xf32> -> vector<8x128xf32>
    %7 = arith.addf %3, %6 : vector<8x128xf32>
    %c0_6 = arith.constant 0 : index
    %c0_7 = arith.constant 0 : index
    %8 = vector.load %arg6[%c0_6, %c0_7] : memref<8x128xf32, #tpu.memory_space<vmem>>, vector<8x128xf32>
    tpu.vector_store %arg6[%c0_6, %c0_7], %7 {strides = array<i32>} : memref<8x128xf32, #tpu.memory_space<vmem>>, vector<8x128xf32>,
    %c0_i32_8 = arith.constant 0 : i32
    %9 = arith.cmpi eq, %arg1, %c0_i32_8 : i32
    %10 = arith.extui %9 : i1 to i32
    %c0_i32_9 = arith.constant 0 : i32
    %11 = arith.cmpi ne, %10, %c0_i32_9 : i32
    scf.if %11 {
      %c0_10 = arith.constant 0 : index
      %c0_11 = arith.constant 0 : index
      %12 = vector.load %arg6[%c0_10, %c0_11] : memref<8x128xf32, #tpu.memory_space<vmem>>, vector<8x128xf32>
      %c0_12 = arith.constant 0 : index
      %c0_13 = arith.constant 0 : index
      %13 = vector.load %arg4[%c0_12, %c0_13] : memref<1x128xf32, #tpu.memory_space<vmem>>, vector<1x128xf32>
      %14 = vector.broadcast %13 : vector<1x128xf32> to vector<8x128xf32>
      %15 = arith.addf %12, %14 : vector<8x128xf32>
      %c0_14 = arith.constant 0 : index
      %c0_15 = arith.constant 0 : index
      %16 = vector.load %arg5[%c0_14, %c0_15] : memref<8x128xf32, #tpu.memory_space<vmem>>, vector<8x128xf32>
      tpu.vector_store %arg5[%c0_14, %c0_15], %15 {strides = array<i32>} : memref<8x128xf32, #tpu.memory_space<vmem>>, vector<8x128xf32>,
    } else {
    }
    return
  }
  func.func @transform_0(%arg0: i32, %arg1: i32) -> (i32, i32) {
    %c0_i32 = arith.constant 0 : i32
    return %arg0, %arg1 : i32, i32
  }
  func.func @transform_1(%arg0: i32, %arg1: i32) -> (i32, i32) {
    %c0_i32 = arith.constant 0 : i32
    %c0_i32_0 = arith.constant 0 : i32
    return %arg1, %c0_i32 : i32, i32
  }
  func.func @transform_2(%arg0: i32, %arg1: i32) -> (i32, i32) {
    %c0_i32 = arith.constant 0 : i32
    %c0_i32_0 = arith.constant 0 : i32
    %c0_i32_1 = arith.constant 0 : i32
    return %c0_i32, %c0_i32_0 : i32, i32
  }
  func.func @transform_3(%arg0: i32, %arg1: i32) -> (i32, i32) {
    %c0_i32 = arith.constant 0 : i32
    %c0_i32_0 = arith.constant 0 : i32
    return %arg0, %c0_i32 : i32, i32
  }
}

</mosaic_0001>

<llo_original>
// kernel: gg_forward.2
$region0: #{gg_forward.2}
  #allocation0 [shape = 'u32[]', space=smem, size = 0x4, offset = 0x4, fixed_abs, tag = 'smem constant byte address 0x4 - core index']
  #allocation1 [shape = 'u32[144,128]{1,0:T(1,128)}', space=vmem, size = 0x12000, scoped, tag = 'internal scratch']
  %s0 = inlined_call_operand.vmem [shape: f32[8,16], index: 0, kind: input, shape index: {}]
  %s1 = inlined_call_operand.vmem [shape: f32[16,128], index: 1, kind: input, shape index: {}]
  %s2 = inlined_call_operand.vmem [shape: bf16[8,128], index: 2, kind: output, shape index: {}]
  %s3 = sld [smem:[#allocation0]]
  $region18: #{gg_forward.2} parent=0
    _
  %s5 = ssub.s32 1, %s3
  %s6 = scalar_select 0, %s5, %s3
  // Predicated region
  $region2: #{gg_forward.2} parent=0 // pred_check
    _
  $region3: #{gg_forward.2} parent=0 // pred_check_branch
    %8 = sbr.rel (0) target = $region5
  $region4: #{gg_forward.2} parent=0 // pred_region
    _
  $region5: #{gg_forward.2} parent=0 // pred_fallthru
    _
  // Predicated region
  $region6: #{gg_forward.2} parent=0 // pred_check
    _
  $region7: #{gg_forward.2} parent=0 // pred_check_branch
    %10 = sbr.rel (0) target = $region9
  $region8: #{gg_forward.2} parent=0 // pred_region
    _
  $region9: #{gg_forward.2} parent=0 // pred_fallthru
    _
  %v12 = vld [vmem:[%s0] sm:$0xff]
  %v13 = vpack.c.bf16 %v12, %v12
  %v14 = vld [vmem:[%s1] sm:$0xff]
  %v15 = vld [vmem:[%s1 + $0x8] sm:$0xff]
  %v16 = vpack.c.bf16 %v15, %v14
  %vm17 = vcmask 130048
  %v19 = vsel %vm17, %v13, 0
  %21 = vmatprep.subr.bf16.mxu0 0
  %22 = vmatpush1.bf16.msra.mxu0 0
  %23 = vmatprep.subr.bf16.mxu0 0
  %24 = vmatpush1.bf16.msra.mxu0 0
  %25 = vmatprep.subr.bf16.mxu0 0
  %26 = vmatpush1.bf16.msra.mxu0 0
  %27 = vmatprep.subr.bf16.mxu0 0
  %28 = vmatpush1.bf16.msra.mxu0 0
  %29 = vmatprep.subr.bf16.mxu0 0
  %30 = vmatpush1.bf16.msra.mxu0 0
  %31 = vmatprep.subr.bf16.mxu0 0
  %32 = vmatpush1.bf16.msra.mxu0 0
  %33 = vmatprep.subr.bf16.mxu0 0
  %34 = vmatpush1.bf16.msra.mxu0 0
  %35 = vmatprep.subr.bf16.mxu0 0
  %36 = vmatpush1.bf16.msra.mxu0 %v16
  %37 = vmatprep.subr.bf16.mxu0 0
  %38 = vmatpush2.bf16.msra.mxu0 0
  %39 = vmatprep.subr.bf16.mxu0 0
  %40 = vmatpush2.bf16.msra.mxu0 0
  %41 = vmatprep.subr.bf16.mxu0 0
  %42 = vmatpush2.bf16.msra.mxu0 0
  %43 = vmatprep.subr.bf16.mxu0 0
  %44 = vmatpush2.bf16.msra.mxu0 0
  %45 = vmatprep.subr.bf16.mxu0 0
  %46 = vmatpush2.bf16.msra.mxu0 0
  %47 = vmatprep.subr.bf16.mxu0 0
  %48 = vmatpush2.bf16.msra.mxu0 0
  %49 = vmatprep.subr.bf16.mxu0 0
  %50 = vmatpush2.bf16.msra.mxu0 0
  %51 = vmatprep.subr.bf16.mxu0 0
  %52 = vmatpush2.bf16.msra.mxu0 0
  %53 = vmatprep.mubr.bf16.mxu0 0
  %54 = vmatmul.mubr.bf16.gmra.mxu0 %v19
  %v55 = vpop.f32.mrf.mxu0
  %v56 = vadd.f32 0.0, %v55
  %v57 = vpop.f32.mrf.mxu0
  %v58 = vpop.f32.mrf.mxu0
  %v59 = vpop.f32.mrf.mxu0
  %60 = vdwg.mxu0
  %v61 = vpack.c.bf16 %v56, %v56
  %62 = vst [vmem:[%s2] sm:$0xf] %v61
  // Predicated region
  $region10: #{gg_forward.2} parent=0 // pred_check
    _
  $region11: #{gg_forward.2} parent=0 // pred_check_branch
    %64 = sbr.rel (0) target = $region13
  $region12: #{gg_forward.2} parent=0 // pred_region
    _
  $region13: #{gg_forward.2} parent=0 // pred_fallthru
    _
  // Predicated region
  $region14: #{gg_forward.2} parent=0 // pred_check
    _
  $region15: #{gg_forward.2} parent=0 // pred_check_branch
    %66 = sbr.rel (0) target = $region17
  $region16: #{gg_forward.2} parent=0 // pred_region
    _
  $region17: #{gg_forward.2} parent=0 // pred_fallthru
    _

// kernel: gg_forward.3
$region0: #{gg_forward.3}
  #allocation0 [shape = 'u32[]', space=smem, size = 0x4, offset = 0x4, fixed_abs, tag = 'smem constant byte address 0x4 - core index']
  #allocation1 [shape = 'u32[144,128]{1,0:T(1,128)}', space=vmem, size = 0x12000, scoped, tag = 'internal scratch']
  #allocation2 [shape = 'f32[8,128]{1,0:T(8,128)}', space=vmem, size = 0x1000, scoped, tag = 'scratch operand']
  %s0 = inlined_call_operand.vmem [shape: bf16[8,8], index: 0, kind: input, shape index: {}]
  %s1 = inlined_call_operand.vmem [shape: bf16[8,128], index: 1, kind: input, shape index: {}]
  %s2 = inlined_call_operand.vmem [shape: f32[1,128], index: 2, kind: input, shape index: {}]
  %s3 = inlined_call_operand.hbm [shape: f32[8,128], index: 3, kind: output, shape index: {}]
  %s4 = sld [smem:[#allocation0]]
  $region30: #{gg_forward.3} parent=0
    _
  %s6 = ssub.s32 1, %s4
  %s7 = scalar_select 0, %s6, %s4
  $region1: #{gg_forward.3} parent=0
    #allocation3 [shape = 'u8[4096]{0}', space=vmem, size = 0x1000, scoped, tag = 'output window, operand 0, single buffered']
    #allocation4 [shape = 's32[1]{0}', space=sflag, size = 0x4, scoped, tag = 'scoped memory for gg_forward.3']
    %8 = vsyncpa [#allocation4], 0
    // Predicated region
    $region2: #{gg_forward.3} parent=1 // pred_check
      _
    $region3: #{gg_forward.3} parent=1 // pred_check_branch
      %10 = sbr.rel (0) target = $region5
    $region4: #{gg_forward.3} parent=1 // pred_region
      _
    $region5: #{gg_forward.3} parent=1 // pred_fallthru
      _
    // Predicated region
    $region6: #{gg_forward.3} parent=1 // pred_check
      _
    $region7: #{gg_forward.3} parent=1 // pred_check_branch
      %12 = sbr.rel (0) target = $region9
    $region8: #{gg_forward.3} parent=1 // pred_region
      _
    $region9: #{gg_forward.3} parent=1 // pred_fallthru
      _
    // Predicated region
    $region10: #{gg_forward.3} parent=1 // pred_check
      _
    $region11: #{gg_forward.3} parent=1 // pred_check_branch
      %14 = sbr.rel (0) target = $region13
    $region12: #{gg_forward.3} parent=1 // pred_region
      _
    $region13: #{gg_forward.3} parent=1 // pred_fallthru
      _
    %p16 = scmp.eq.s32.totalorder 0, 0
    // Predicated region
    $region14: #{gg_forward.3} parent=1 // pred_check
      %p17 = pneg %p16
    $region15: #{gg_forward.3} parent=1 // pred_check_branch
      %19 = sbr.rel (%p17) target = $region17
    $region16: #{gg_forward.3} parent=1 // pred_region
      %20 = vst [vmem:[#allocation2] sm:$0xff] 0.0
    $region17: #{gg_forward.3} parent=1 // pred_fallthru
      _
    %v21 = vld [vmem:[#allocation2] sm:$0xff]
    %v22 = vld [vmem:[%s0] sm:$0xf]
    %v23 = vld [vmem:[%s1] sm:$0xf]
    %vm24 = vcmask 64512
    %v26 = vsel %vm24, %v22, 0
    %vm28 = vcmask 1043456
    %v30 = vsel %vm28, %v23, 0
    %32 = vmatprep.subr.bf16.mxu0 0
    %33 = vmatpush1.bf16.msra.mxu0 0
    %34 = vmatprep.subr.bf16.mxu0 0
    %35 = vmatpush1.bf16.msra.mxu0 0
    %36 = vmatprep.subr.bf16.mxu0 0
    %37 = vmatpush1.bf16.msra.mxu0 0
    %38 = vmatprep.subr.bf16.mxu0 0
    %39 = vmatpush1.bf16.msra.mxu0 0
    %40 = vmatprep.subr.bf16.mxu0 0
    %41 = vmatpush1.bf16.msra.mxu0 0
    %42 = vmatprep.subr.bf16.mxu0 0
    %43 = vmatpush1.bf16.msra.mxu0 0
    %44 = vmatprep.subr.bf16.mxu0 0
    %45 = vmatpush1.bf16.msra.mxu0 0
    %46 = vmatprep.subr.bf16.mxu0 0
    %47 = vmatpush1.bf16.msra.mxu0 %v30
    %48 = vmatprep.subr.bf16.mxu0 0
    %49 = vmatpush2.bf16.msra.mxu0 0
    %50 = vmatprep.subr.bf16.mxu0 0
    %51 = vmatpush2.bf16.msra.mxu0 0
    %52 = vmatprep.subr.bf16.mxu0 0
    %53 = vmatpush2.bf16.msra.mxu0 0
    %54 = vmatprep.subr.bf16.mxu0 0
    %55 = vmatpush2.bf16.msra.mxu0 0
    %56 = vmatprep.subr.bf16.mxu0 0
    %57 = vmatpush2.bf16.msra.mxu0 0
    %58 = vmatprep.subr.bf16.mxu0 0
    %59 = vmatpush2.bf16.msra.mxu0 0
    %60 = vmatprep.subr.bf16.mxu0 0
    %61 = vmatpush2.bf16.msra.mxu0 0
    %62 = vmatprep.subr.bf16.mxu0 0
    %63 = vmatpush2.bf16.msra.mxu0 0
    %64 = vmatprep.mubr.bf16.mxu0 0
    %65 = vmatmul.mubr.bf16.gmra.mxu0 %v26
    %v66 = vpop.f32.mrf.mxu0
    %v67 = vadd.f32 0.0, %v66
    %v68 = vpop.f32.mrf.mxu0
    %v69 = vpop.f32.mrf.mxu0
    %v70 = vpop.f32.mrf.mxu0
    %71 = vdwg.mxu0
    %v72 = vadd.f32 %v21, %v67
    %73 = vst [vmem:[#allocation2] sm:$0xff] %v72
    // Predicated region
    $region18: #{gg_forward.3} parent=1 // pred_check
      %p74 = pneg %p16
    $region19: #{gg_forward.3} parent=1 // pred_check_branch
      %76 = sbr.rel (%p74) target = $region21
    $region20: #{gg_forward.3} parent=1 // pred_region
      %v77 = vld [vmem:[#allocation2] sm:$0xff]
      %v78 = vld [vmem:[%s2] sm:$0x1]
      %v80 = vlaneseq
      %v81 = vshrl.u32 %v80, 7
      %v82 = vsub.s32 0, %v81
      %v83 = vrot.slane %v78, %v82
      %v85 = vadd.f32 %v77, %v83
      %86 = vst [vmem:[#allocation3] sm:$0xff] %v85
    $region21: #{gg_forward.3} parent=1 // pred_fallthru
      _
    // Predicated region
    $region22: #{gg_forward.3} parent=1 // pred_check
      _
    $region23: #{gg_forward.3} parent=1 // pred_check_branch
      %88 = sbr.rel (0) target = $region25
    $region24: #{gg_forward.3} parent=1 // pred_region
      %s90 = ssub.s32 128, 128
      %91 = vsyncadd [#allocation4], %s90
      %s93 = sshll.u32 [#allocation3], 4
      %s94 = int_to_ptr.vmem [resolvable:$true] %s93
      %96 = dma.vmem_to_hbm [thread:$0]  %s94, 128, %s3, [#allocation4]
    $region25: #{gg_forward.3} parent=1 // pred_fallthru
      _
    // Predicated region
    $region26: #{gg_forward.3} parent=1 // pred_check
      _
    $region27: #{gg_forward.3} parent=1 // pred_check_branch
      %98 = sbr.rel (0) target = $region29
    $region28: #{gg_forward.3} parent=1 // pred_region
      %99 = dma.done [#allocation4], 128
    $region29: #{gg_forward.3} parent=1 // pred_fallthru
      _
    %100 = vsyncpa [#allocation4], 1

</llo_original>
